<compile_context>
chip_gen: v7x
topology: tpu7x:2x2x1
jax: 0.10.0
libtpu: 0.0.40
codegen_flags: <defaults>
</compile_context>

<pallas_src>
import jax
import jax.numpy as jnp
from jax.experimental import pallas as pl
from jax.experimental.pallas import tpu as pltpu

INFL = 3
IN_DIM = 28 * 28          # 784, fixed by x.view(-1, 28*28); NOT padded (see review)
H1 = 64 * INFL            # 192 (literal fc1 out_features)
H2 = 32 * INFL            # 96
H3 = 16 * INFL            # 48
H1P, H2P, H3P = 256, 128, 128   # lane-padded hidden widths used inside the kernel
OUT_DIM = 10
OUT_PAD = 128             # lane-dense output slab; sliced to 10 in the wrapper
BN_EPS = 1e-5
TB_MAX = 1024             # batch tile: big enough to amortize ~600-cycle/step overhead,
                          # ~5 MiB/step footprint -> far inside every generation's VMEM
NEG_BIG = -1e30           # f32 pad bias: exp(NEG_BIG - m) == 0 exactly (must stay f32)


def _round_up(x, m):
    return (x + m - 1) // m * m


def _cdiv(a, b):
    return -(-a // b)


def _sign_pm1(t, dtype):
    # sign() with sign(0) -> +1 (deterministic BNN convention); +/-1 exact in bf16.
    return jnp.where(t >= 0, 1.0, -1.0).astype(dtype)


# ----------------------------------------------------------------------------- kernel
def net_kernel(x_ref,
               w1_ref, s1_ref, t1_ref,
               w2_ref, s2_ref, t2_ref,
               w3_ref, s3_ref, t3_ref,
               w4_ref, b4_ref,
               o_ref):
    # fc1 (BinarizeLinear, 784-wide input is NOT binarized; weights pre-binarized bf16,
    # zero-padded to 256 output lanes -> padded lanes produce exactly 0).
    h = jnp.dot(x_ref[...], w1_ref[...], preferred_element_type=jnp.float32)   # (TB, 256)
    h = h * s1_ref[...] + t1_ref[...]          # bn1 (fc1 bias folded into shift; pads stay 0)
    # hardtanh1 dropped: sign(clip(x,-1,1)) == sign(x); sign(0)=+1 on padded lanes is
    # neutralized by the zero rows of w2.

    # fc2 (BinarizeLinear: binarize activations and weights)
    h = jnp.dot(_sign_pm1(h, jnp.bfloat16), w2_ref[...],
                preferred_element_type=jnp.float32)                            # (TB, 128)
    h = h * s2_ref[...] + t2_ref[...]
    # hardtanh2 dropped (same argument; zero rows of w3 neutralize padded lanes).

    # fc3 (BinarizeLinear); dropout(0.3) is identity in eval mode
    h = jnp.dot(_sign_pm1(h, jnp.bfloat16), w3_ref[...],
                preferred_element_type=jnp.float32)                            # (TB, 128)
    h = h * s3_ref[...] + t3_ref[...]
    h = jnp.clip(h, -1.0, 1.0)                 # hardtanh3: feeds fc4 un-binarized -> keep

    # fc4 (plain Linear, row-padded to 128-K, col-padded to 128 lanes) + stable log-softmax
    logits = jnp.dot(h.astype(jnp.bfloat16), w4_ref[...],
                     preferred_element_type=jnp.float32) + b4_ref[...]         # (TB, 128)
    m = jnp.max(logits, axis=-1, keepdims=True)
    lse = jnp.log(jnp.sum(jnp.exp(logits - m), axis=-1, keepdims=True)) + m
    o_ref[...] = logits - lse
    # NOTE: output kept f32; casting the store to bf16 would halve writeback bytes if
    # downstream tolerates bf16 log-probs (optional, per review).


# ----------------------------------------------------------------------------- wrapper
def _resident(arr):
    # Full-array block, constant block index -> stays VMEM-resident across grid steps.
    nd = arr.ndim
    return pl.BlockSpec(arr.shape, lambda i, _nd=nd: (0,) * _nd)


def _fold_bn_bias(bias, gamma, beta, mean, var):
    # eval-mode BN folded with the preceding linear bias: (h + b)*s + t == h*s + (b*s + t)
    scale = gamma / jnp.sqrt(var + BN_EPS)
    shift = beta - mean * scale + bias * scale
    return scale.astype(jnp.float32), shift.astype(jnp.float32)


def _pad_cols(a, new_cols, value=0.0):
    return jnp.pad(a, ((0, 0), (0, new_cols - a.shape[1])), constant_values=value)


def _choose_batch_tiling(b):
    # steps = cdiv(b, TB_MAX), rounded up to an even grid (both v7x TCs via the
    # "parallel" batch axis) whenever each core can get >= 8 real rows; tile rows
    # 8-aligned.  b=300 -> tb=152, b_pad=304 (was 512); b=2048 -> tb=1024, grid=(2,).
    steps = _cdiv(b, TB_MAX)
    if b >= 16:
        steps = _round_up(steps, 2)
    tb = _round_up(_cdiv(b, steps), 8)
    return tb, steps * tb


@jax.jit
def net_forward(x_img, params):
    b = x_img.shape[0]
    x = x_img.reshape(b, IN_DIM).astype(jnp.float32)   # == x.view(-1, 28*28)

    tb, b_pad = _choose_batch_tiling(b)
    if b_pad != b:
        x = jnp.pad(x, ((0, b_pad - b), (0, 0)))
    x = x.astype(jnp.bfloat16)                          # halves input DMA bytes

    # Pre-binarized weights (hoisted; const-folds under jit).  Pad AFTER binarization so
    # the pad stays exactly zero; zero *rows* of the next layer kill sign(0)=+1 pad lanes.
    wb1 = jnp.pad(_sign_pm1(params["w1"], jnp.bfloat16),
                  ((0, 0), (0, H1P - H1)))                       # (784, 256)
    wb2 = jnp.pad(_sign_pm1(params["w2"], jnp.bfloat16),
                  ((0, H1P - H1), (0, H2P - H2)))                # (256, 128)
    wb3 = jnp.pad(_sign_pm1(params["w3"], jnp.bfloat16),
                  ((0, H2P - H2), (0, H3P - H3)))                # (128, 128)

    s1, t1 = _fold_bn_bias(params["b1"], *params["bn1"])
    s2, t2 = _fold_bn_bias(params["b2"], *params["bn2"])
    s3, t3 = _fold_bn_bias(params["b3"], *params["bn3"])
    s1, t1 = _pad_cols(s1, H1P), _pad_cols(t1, H1P)              # pad lanes -> 0 post-BN
    s2, t2 = _pad_cols(s2, H2P), _pad_cols(t2, H2P)
    s3, t3 = _pad_cols(s3, H3P), _pad_cols(t3, H3P)

    # fc4: row-pad to the padded H3 (zero rows; padded h3 lanes are 0 anyway), col-pad to
    # a lane-dense 128-wide output; padded bias = -1e30 (f32!) so padded lanes contribute
    # exactly 0 to the softmax denominator.
    w4 = jnp.pad(params["w4"], ((0, H3P - H3), (0, OUT_PAD - OUT_DIM))).astype(jnp.bfloat16)
    b4 = jnp.pad(params["b4"], ((0, 0), (0, OUT_PAD - OUT_DIM)),
                 constant_values=NEG_BIG).astype(jnp.float32)

    args = (x,
            wb1, s1, t1,
            wb2, s2, t2,
            wb3, s3, t3,
            w4, b4)

    flops = 2 * b_pad * (IN_DIM * H1P + H1P * H2P + H2P * H3P + H3P * OUT_PAD)
    bytes_accessed = (x.size * 2
                      + (wb1.size + wb2.size + wb3.size + w4.size) * 2
                      + (s1.size + t1.size + s2.size + t2.size
                         + s3.size + t3.size + b4.size) * 4
                      + b_pad * OUT_PAD * 4)

    out = pl.pallas_call(
        net_kernel,
        out_shape=jax.ShapeDtypeStruct((b_pad, OUT_PAD), jnp.float32),
        grid=(b_pad // tb,),
        in_specs=[pl.BlockSpec((tb, IN_DIM), lambda i: (i, 0))]
                 + [_resident(a) for a in args[1:]],
        out_specs=pl.BlockSpec((tb, OUT_PAD), lambda i: (i, 0)),
        compiler_params=pltpu.CompilerParams(
            dimension_semantics=("parallel",),        # megacore sharding on v7x
            vmem_limit_bytes=32 * 1024 * 1024),
        cost_estimate=pl.CostEstimate(
            flops=flops,
            transcendentals=b_pad * (OUT_PAD + 1),
            bytes_accessed=bytes_accessed),
    )(*args)

    return out[:b, :OUT_DIM]


# ----------------------------------------------------------------------------- reference
@jax.jit
def net_reference(x_img, params):
    # Pure-JAX reference at the ORIGINAL (unpadded) widths, with the same bf16
    # quantization points as the kernel and all three hardtanh clips kept.
    b = x_img.shape[0]
    x = x_img.reshape(b, IN_DIM).astype(jnp.bfloat16)

    s1, t1 = _fold_bn_bias(params["b1"], *params["bn1"])
    s2, t2 = _fold_bn_bias(params["b2"], *params["bn2"])
    s3, t3 = _fold_bn_bias(params["b3"], *params["bn3"])

    h = jnp.dot(x, _sign_pm1(params["w1"], jnp.bfloat16),
                preferred_element_type=jnp.float32)
    h = jnp.clip(h * s1 + t1, -1.0, 1.0)
    h = jnp.dot(_sign_pm1(h, jnp.bfloat16), _sign_pm1(params["w2"], jnp.bfloat16),
                preferred_element_type=jnp.float32)
    h = jnp.clip(h * s2 + t2, -1.0, 1.0)
    h = jnp.dot(_sign_pm1(h, jnp.bfloat16), _sign_pm1(params["w3"], jnp.bfloat16),
                preferred_element_type=jnp.float32)
    h = jnp.clip(h * s3 + t3, -1.0, 1.0)
    logits = jnp.dot(h.astype(jnp.bfloat16), params["w4"].astype(jnp.bfloat16),
                     preferred_element_type=jnp.float32) + params["b4"]
    return jax.nn.log_softmax(logits, axis=-1)


# ----------------------------------------------------------------------------- params
def init_params(key):
    ks = jax.random.split(key, 16)
    p = {}

    def linear(kw, kb, fan_in, fan_out):
        bound = 1.0 / jnp.sqrt(fan_in)
        w = jax.random.uniform(kw, (fan_in, fan_out), jnp.float32, -bound, bound)
        b = jax.random.uniform(kb, (1, fan_out), jnp.float32, -bound, bound)
        return w, b

    p["w1"], p["b1"] = linear(ks[0], ks[1], IN_DIM, H1)
    p["w2"], p["b2"] = linear(ks[2], ks[3], H1, H2)
    p["w3"], p["b3"] = linear(ks[4], ks[5], H2, H3)
    p["w4"], p["b4"] = linear(ks[6], ks[7], H3, OUT_DIM)

    def bn(kg, kb, km, kv, dim):
        gamma = 1.0 + 0.1 * jax.random.normal(kg, (1, dim), jnp.float32)
        beta = 0.1 * jax.random.normal(kb, (1, dim), jnp.float32)
        mean = 0.05 * jax.random.normal(km, (1, dim), jnp.float32)
        var = 0.5 + jnp.abs(jax.random.normal(kv, (1, dim), jnp.float32))
        return gamma, beta, mean, var

    p["bn1"] = bn(ks[8], ks[9], ks[10], ks[11], H1)
    p["bn2"] = bn(ks[12], ks[13], ks[14], ks[15], H2)
    kk = jax.random.split(ks[15], 4)
    p["bn3"] = bn(kk[0], kk[1], kk[2], kk[3], H3)
    return p


if __name__ == "__main__":
    key = jax.random.PRNGKey(0)
    k_x, k_p = jax.random.split(key)
    params = init_params(k_p)

    # Primary small-shape check (matches MNIST NCHW input layout): grid=(1,), tb=8.
    BATCH = 8
    x_img = jax.random.normal(k_x, (BATCH, 1, 28, 28), jnp.float32)
    out = jax.block_until_ready(net_forward(x_img, params))
    ref = jax.block_until_ready(net_reference(x_img, params))

    assert out.shape == (BATCH, OUT_DIM)
    assert bool(jnp.all(jnp.isfinite(out)))
    # log-softmax rows sum to 1 in prob space
    assert jnp.allclose(jnp.sum(jnp.exp(out), axis=-1), 1.0, atol=1e-4)
    assert jnp.allclose(out, ref, atol=1e-2)

    # Larger batch exercises the new tb/b_pad selection (b=300 -> tb=152, b_pad=304,
    # grid=(2,) "parallel") and the multi-step pipeline.
    x_big = jax.random.normal(jax.random.PRNGKey(1), (300, 1, 28, 28), jnp.float32)
    out_big = jax.block_until_ready(net_forward(x_big, params))
    ref_big = jax.block_until_ready(net_reference(x_big, params))
    assert out_big.shape == (300, OUT_DIM)
    assert bool(jnp.all(jnp.isfinite(out_big)))
    assert jnp.allclose(jnp.sum(jnp.exp(out_big), axis=-1), 1.0, atol=1e-4)
    assert jnp.allclose(out_big, ref_big, atol=1e-2)

    print("KERNEL_OK")
</pallas_src>

<mosaic_0001>
module attributes {stable_mosaic.version = 11 : i64} {
  func.func @net_kernel(%arg0: i32, %arg1: memref<8x784xbf16, #tpu.memory_space<vmem>>, %arg2: memref<784x256xbf16, #tpu.memory_space<vmem>>, %arg3: memref<1x256xf32, #tpu.memory_space<vmem>>, %arg4: memref<1x256xf32, #tpu.memory_space<vmem>>, %arg5: memref<256x128xbf16, #tpu.memory_space<vmem>>, %arg6: memref<1x128xf32, #tpu.memory_space<vmem>>, %arg7: memref<1x128xf32, #tpu.memory_space<vmem>>, %arg8: memref<128x128xbf16, #tpu.memory_space<vmem>>, %arg9: memref<1x128xf32, #tpu.memory_space<vmem>>, %arg10: memref<1x128xf32, #tpu.memory_space<vmem>>, %arg11: memref<128x128xbf16, #tpu.memory_space<vmem>>, %arg12: memref<1x128xf32, #tpu.memory_space<vmem>>, %arg13: memref<8x128xf32, #tpu.memory_space<vmem>>) attributes {dimension_semantics = [#tpu.dimension_semantics<parallel>], iteration_bounds = array<i64: 1>, scalar_prefetch = 0 : i64, scratch_operands = 0 : i64, tpu.core_type = #tpu.core_type<tc>, window_params = [{transform_indices = @transform_0, window_bounds = array<i64: 8, 784>}, {pipeline_mode = #tpu.pipeline_mode<synchronous>, transform_indices = @transform_1, window_bounds = array<i64: 784, 256>}, {pipeline_mode = #tpu.pipeline_mode<synchronous>, transform_indices = @transform_2, window_bounds = array<i64: 1, 256>}, {pipeline_mode = #tpu.pipeline_mode<synchronous>, transform_indices = @transform_3, window_bounds = array<i64: 1, 256>}, {pipeline_mode = #tpu.pipeline_mode<synchronous>, transform_indices = @transform_4, window_bounds = array<i64: 256, 128>}, {pipeline_mode = #tpu.pipeline_mode<synchronous>, transform_indices = @transform_5, window_bounds = array<i64: 1, 128>}, {pipeline_mode = #tpu.pipeline_mode<synchronous>, transform_indices = @transform_6, window_bounds = array<i64: 1, 128>}, {pipeline_mode = #tpu.pipeline_mode<synchronous>, transform_indices = @transform_7, window_bounds = array<i64: 128, 128>}, {pipeline_mode = #tpu.pipeline_mode<synchronous>, transform_indices = @transform_8, window_bounds = array<i64: 1, 128>}, {pipeline_mode = #tpu.pipeline_mode<synchronous>, transform_indices = @transform_9, window_bounds = array<i64: 1, 128>}, {pipeline_mode = #tpu.pipeline_mode<synchronous>, transform_indices = @transform_10, window_bounds = array<i64: 128, 128>}, {pipeline_mode = #tpu.pipeline_mode<synchronous>, transform_indices = @transform_11, window_bounds = array<i64: 1, 128>}, {transform_indices = @transform_12, window_bounds = array<i64: 8, 128>}]} {
    %c0 = arith.constant 0 : index
    %c0_0 = arith.constant 0 : index
    %0 = vector.load %arg1[%c0, %c0_0] : memref<8x784xbf16, #tpu.memory_space<vmem>>, vector<8x784xbf16>
    %c0_1 = arith.constant 0 : index
    %c0_2 = arith.constant 0 : index
    %1 = vector.load %arg2[%c0_1, %c0_2] : memref<784x256xbf16, #tpu.memory_space<vmem>>, vector<784x256xbf16>
    %cst = arith.constant dense<0.000000e+00> : vector<8x256xf32>
    %2 = tpu.matmul %0, %1, %cst {dimension_numbers = #tpu.dot_dimension_numbers<[1], [0], [0], [1], [0, 0, 1, 1], [], []>} : vector<8x784xbf16>, vector<784x256xbf16>, vector<8x256xf32> -> vector<8x256xf32>
    %c0_3 = arith.constant 0 : index
    %c0_4 = arith.constant 0 : index
    %3 = vector.load %arg3[%c0_3, %c0_4] : memref<1x256xf32, #tpu.memory_space<vmem>>, vector<1x256xf32>
    %4 = vector.broadcast %3 : vector<1x256xf32> to vector<8x256xf32>
    %5 = arith.mulf %2, %4 : vector<8x256xf32>
    %c0_5 = arith.constant 0 : index
    %c0_6 = arith.constant 0 : index
    %6 = vector.load %arg4[%c0_5, %c0_6] : memref<1x256xf32, #tpu.memory_space<vmem>>, vector<1x256xf32>
    %7 = vector.broadcast %6 : vector<1x256xf32> to vector<8x256xf32>
    %8 = arith.addf %5, %7 : vector<8x256xf32>
    %cst_7 = arith.constant 0.000000e+00 : f32
    %9 = vector.broadcast %cst_7 : f32 to vector<8x256xf32>
    %10 = arith.cmpf oge, %8, %9 : vector<8x256xf32>
    %cst_8 = arith.constant 1.000000e+00 : f32
    %cst_9 = arith.constant -1.000000e+00 : f32
    %11 = vector.broadcast %cst_8 : f32 to vector<8x256xf32>
    %12 = vector.broadcast %cst_9 : f32 to vector<8x256xf32>
    %13 = arith.select %10, %11, %12 : vector<8x256xi1>, vector<8x256xf32>
    %14 = arith.truncf %13 : vector<8x256xf32> to vector<8x256xbf16>
    %c0_10 = arith.constant 0 : index
    %c0_11 = arith.constant 0 : index
    %15 = vector.load %arg5[%c0_10, %c0_11] : memref<256x128xbf16, #tpu.memory_space<vmem>>, vector<256x128xbf16>
    %cst_12 = arith.constant dense<0.000000e+00> : vector<8x128xf32>
    %16 = tpu.matmul %14, %15, %cst_12 {dimension_numbers = #tpu.dot_dimension_numbers<[1], [0], [0], [1], [0, 0, 1, 1], [], []>} : vector<8x256xbf16>, vector<256x128xbf16>, vector<8x128xf32> -> vector<8x128xf32>
    %c0_13 = arith.constant 0 : index
    %c0_14 = arith.constant 0 : index
    %17 = vector.load %arg6[%c0_13, %c0_14] : memref<1x128xf32, #tpu.memory_space<vmem>>, vector<1x128xf32>
    %18 = vector.broadcast %17 : vector<1x128xf32> to vector<8x128xf32>
    %19 = arith.mulf %16, %18 : vector<8x128xf32>
    %c0_15 = arith.constant 0 : index
    %c0_16 = arith.constant 0 : index
    %20 = vector.load %arg7[%c0_15, %c0_16] : memref<1x128xf32, #tpu.memory_space<vmem>>, vector<1x128xf32>
    %21 = vector.broadcast %20 : vector<1x128xf32> to vector<8x128xf32>
    %22 = arith.addf %19, %21 : vector<8x128xf32>
    %cst_17 = arith.constant 0.000000e+00 : f32
    %23 = vector.broadcast %cst_17 : f32 to vector<8x128xf32>
    %24 = arith.cmpf oge, %22, %23 : vector<8x128xf32>
    %cst_18 = arith.constant 1.000000e+00 : f32
    %cst_19 = arith.constant -1.000000e+00 : f32
    %25 = vector.broadcast %cst_18 : f32 to vector<8x128xf32>
    %26 = vector.broadcast %cst_19 : f32 to vector<8x128xf32>
    %27 = arith.select %24, %25, %26 : vector<8x128xi1>, vector<8x128xf32>
    %28 = arith.truncf %27 : vector<8x128xf32> to vector<8x128xbf16>
    %c0_20 = arith.constant 0 : index
    %c0_21 = arith.constant 0 : index
    %29 = vector.load %arg8[%c0_20, %c0_21] : memref<128x128xbf16, #tpu.memory_space<vmem>>, vector<128x128xbf16>
    %cst_22 = arith.constant dense<0.000000e+00> : vector<8x128xf32>
    %30 = tpu.matmul %28, %29, %cst_22 {dimension_numbers = #tpu.dot_dimension_numbers<[1], [0], [0], [1], [0, 0, 1, 1], [], []>} : vector<8x128xbf16>, vector<128x128xbf16>, vector<8x128xf32> -> vector<8x128xf32>
    %c0_23 = arith.constant 0 : index
    %c0_24 = arith.constant 0 : index
    %31 = vector.load %arg9[%c0_23, %c0_24] : memref<1x128xf32, #tpu.memory_space<vmem>>, vector<1x128xf32>
    %32 = vector.broadcast %31 : vector<1x128xf32> to vector<8x128xf32>
    %33 = arith.mulf %30, %32 : vector<8x128xf32>
    %c0_25 = arith.constant 0 : index
    %c0_26 = arith.constant 0 : index
    %34 = vector.load %arg10[%c0_25, %c0_26] : memref<1x128xf32, #tpu.memory_space<vmem>>, vector<1x128xf32>
    %35 = vector.broadcast %34 : vector<1x128xf32> to vector<8x128xf32>
    %36 = arith.addf %33, %35 : vector<8x128xf32>
    %cst_27 = arith.constant -1.000000e+00 : f32
    %cst_28 = arith.constant 1.000000e+00 : f32
    %37 = vector.broadcast %cst_27 : f32 to vector<8x128xf32>
    %38 = arith.maximumf %37, %36 : vector<8x128xf32>
    %39 = vector.broadcast %cst_28 : f32 to vector<8x128xf32>
    %40 = arith.minimumf %39, %38 : vector<8x128xf32>
    %41 = arith.truncf %40 : vector<8x128xf32> to vector<8x128xbf16>
    %c0_29 = arith.constant 0 : index
    %c0_30 = arith.constant 0 : index
    %42 = vector.load %arg11[%c0_29, %c0_30] : memref<128x128xbf16, #tpu.memory_space<vmem>>, vector<128x128xbf16>
    %cst_31 = arith.constant dense<0.000000e+00> : vector<8x128xf32>
    %43 = tpu.matmul %41, %42, %cst_31 {dimension_numbers = #tpu.dot_dimension_numbers<[1], [0], [0], [1], [0, 0, 1, 1], [], []>} : vector<8x128xbf16>, vector<128x128xbf16>, vector<8x128xf32> -> vector<8x128xf32>
    %c0_32 = arith.constant 0 : index
    %c0_33 = arith.constant 0 : index
    %44 = vector.load %arg12[%c0_32, %c0_33] : memref<1x128xf32, #tpu.memory_space<vmem>>, vector<1x128xf32>
    %45 = vector.broadcast %44 : vector<1x128xf32> to vector<8x128xf32>
    %46 = arith.addf %43, %45 : vector<8x128xf32>
    %cst_34 = arith.constant dense<0xFF800000> : vector<8xf32>
    %47 = vector.multi_reduction <maximumf>, %46, %cst_34 [1] : vector<8x128xf32> to vector<8xf32>
    %48 = vector.shape_cast %47 : vector<8xf32> to vector<8x1xf32>
    %49 = vector.broadcast %48 : vector<8x1xf32> to vector<8x128xf32>
    %50 = arith.subf %46, %49 : vector<8x128xf32>
    %51 = math.exp %50 : vector<8x128xf32>
    %cst_35 = arith.constant dense<0.000000e+00> : vector<8xf32>
    %52 = vector.multi_reduction <add>, %51, %cst_35 [1] : vector<8x128xf32> to vector<8xf32>
    %53 = vector.shape_cast %52 : vector<8xf32> to vector<8x1xf32>
    %54 = math.log %53 : vector<8x1xf32>
    %55 = arith.addf %54, %48 : vector<8x1xf32>
    %56 = vector.broadcast %55 : vector<8x1xf32> to vector<8x128xf32>
    %57 = arith.subf %46, %56 : vector<8x128xf32>
    %c0_36 = arith.constant 0 : index
    %c0_37 = arith.constant 0 : index
    %58 = vector.load %arg13[%c0_36, %c0_37] : memref<8x128xf32, #tpu.memory_space<vmem>>, vector<8x128xf32>
    tpu.vector_store %arg13[%c0_36, %c0_37], %57 {strides = array<i32>} : memref<8x128xf32, #tpu.memory_space<vmem>>, vector<8x128xf32>,
    return
  }
  func.func @transform_0(%arg0: i32) -> (i32, i32) {
    %c0_i32 = arith.constant 0 : i32
    %c0_i32_0 = arith.constant 0 : i32
    return %arg0, %c0_i32 : i32, i32
  }
  func.func @transform_1(%arg0: i32) -> (i32, i32) {
    %c0_i32 = arith.constant 0 : i32
    %c0_i32_0 = arith.constant 0 : i32
    %c0_i32_1 = arith.constant 0 : i32
    return %c0_i32, %c0_i32_0 : i32, i32
  }
  func.func @transform_2(%arg0: i32) -> (i32, i32) {
    %c0_i32 = arith.constant 0 : i32
    %c0_i32_0 = arith.constant 0 : i32
    %c0_i32_1 = arith.constant 0 : i32
    return %c0_i32, %c0_i32_0 : i32, i32
  }
  func.func @transform_3(%arg0: i32) -> (i32, i32) {
    %c0_i32 = arith.constant 0 : i32
    %c0_i32_0 = arith.constant 0 : i32
    %c0_i32_1 = arith.constant 0 : i32
    return %c0_i32, %c0_i32_0 : i32, i32
  }
  func.func @transform_4(%arg0: i32) -> (i32, i32) {
    %c0_i32 = arith.constant 0 : i32
    %c0_i32_0 = arith.constant 0 : i32
    %c0_i32_1 = arith.constant 0 : i32
    return %c0_i32, %c0_i32_0 : i32, i32
  }
  func.func @transform_5(%arg0: i32) -> (i32, i32) {
    %c0_i32 = arith.constant 0 : i32
    %c0_i32_0 = arith.constant 0 : i32
    %c0_i32_1 = arith.constant 0 : i32
    return %c0_i32, %c0_i32_0 : i32, i32
  }
  func.func @transform_6(%arg0: i32) -> (i32, i32) {
    %c0_i32 = arith.constant 0 : i32
    %c0_i32_0 = arith.constant 0 : i32
    %c0_i32_1 = arith.constant 0 : i32
    return %c0_i32, %c0_i32_0 : i32, i32
  }
  func.func @transform_7(%arg0: i32) -> (i32, i32) {
    %c0_i32 = arith.constant 0 : i32
    %c0_i32_0 = arith.constant 0 : i32
    %c0_i32_1 = arith.constant 0 : i32
    return %c0_i32, %c0_i32_0 : i32, i32
  }
  func.func @transform_8(%arg0: i32) -> (i32, i32) {
    %c0_i32 = arith.constant 0 : i32
    %c0_i32_0 = arith.constant 0 : i32
    %c0_i32_1 = arith.constant 0 : i32
    return %c0_i32, %c0_i32_0 : i32, i32
  }
  func.func @transform_9(%arg0: i32) -> (i32, i32) {
    %c0_i32 = arith.constant 0 : i32
    %c0_i32_0 = arith.constant 0 : i32
    %c0_i32_1 = arith.constant 0 : i32
    return %c0_i32, %c0_i32_0 : i32, i32
  }
  func.func @transform_10(%arg0: i32) -> (i32, i32) {
    %c0_i32 = arith.constant 0 : i32
    %c0_i32_0 = arith.constant 0 : i32
    %c0_i32_1 = arith.constant 0 : i32
    return %c0_i32, %c0_i32_0 : i32, i32
  }
  func.func @transform_11(%arg0: i32) -> (i32, i32) {
    %c0_i32 = arith.constant 0 : i32
    %c0_i32_0 = arith.constant 0 : i32
    %c0_i32_1 = arith.constant 0 : i32
    return %c0_i32, %c0_i32_0 : i32, i32
  }
  func.func @transform_12(%arg0: i32) -> (i32, i32) {
    %c0_i32 = arith.constant 0 : i32
    %c0_i32_0 = arith.constant 0 : i32
    return %arg0, %c0_i32 : i32, i32
  }
}

</mosaic_0001>

<llo_original>
// kernel: net_forward.1
$region0: #{net_forward.1}
  #allocation0 [shape = 'u32[]', space=smem, size = 0x4, offset = 0x4, fixed_abs, tag = 'smem constant byte address 0x4 - core index']
  #allocation1 [shape = 'u32[144,128]{1,0:T(1,128)}', space=vmem, size = 0x12000, scoped, tag = 'internal scratch']
  %s0 = inlined_call_operand.vmem [shape: bf16[8,784], index: 0, kind: input, shape index: {}]
  %s1 = inlined_call_operand.vmem [shape: bf16[784,256], index: 1, kind: input, shape index: {}]
  %s2 = inlined_call_operand.vmem [shape: f32[1,256], index: 2, kind: input, shape index: {}]
  %s3 = inlined_call_operand.vmem [shape: f32[1,256], index: 3, kind: input, shape index: {}]
  %s4 = inlined_call_operand.vmem [shape: bf16[256,128], index: 4, kind: input, shape index: {}]
  %s5 = inlined_call_operand.vmem [shape: f32[1,128], index: 5, kind: input, shape index: {}]
  %s6 = inlined_call_operand.vmem [shape: f32[1,128], index: 6, kind: input, shape index: {}]
  %s7 = inlined_call_operand.vmem [shape: bf16[128,128], index: 7, kind: input, shape index: {}]
  %s8 = inlined_call_operand.vmem [shape: f32[1,128], index: 8, kind: input, shape index: {}]
  %s9 = inlined_call_operand.vmem [shape: f32[1,128], index: 9, kind: input, shape index: {}]
  %s10 = inlined_call_operand.vmem [shape: bf16[128,128], index: 10, kind: input, shape index: {}]
  %s11 = inlined_call_operand.vmem [shape: f32[1,128], index: 11, kind: input, shape index: {}]
  %s12 = inlined_call_operand.hbm [shape: f32[8,128], index: 12, kind: output, shape index: {}]
  %s13 = sld [smem:[#allocation0]]
  $region58: #{net_forward.1} parent=0
    _
  %s15 = ssub.s32 1, %s13
  %s16 = scalar_select 0, %s15, %s13
  $region1: #{net_forward.1} parent=0
    #allocation2 [shape = 'u8[4096]{0}', space=vmem, size = 0x1000, scoped, tag = 'output window, operand 0, single buffered']
    #allocation3 [shape = 's32[1]{0}', space=sflag, size = 0x4, scoped, tag = 'scoped memory for net_forward.1']
    %17 = vsyncpa [#allocation3], 0
    // Predicated region
    $region2: #{net_forward.1} parent=1 // pred_check
      _
    $region3: #{net_forward.1} parent=1 // pred_check_branch
      %19 = sbr.rel (0) target = $region5
    $region4: #{net_forward.1} parent=1 // pred_region
      _
    $region5: #{net_forward.1} parent=1 // pred_fallthru
      _
    // Predicated region
    $region6: #{net_forward.1} parent=1 // pred_check
      _
    $region7: #{net_forward.1} parent=1 // pred_check_branch
      %21 = sbr.rel (0) target = $region9
    $region8: #{net_forward.1} parent=1 // pred_region
      _
    $region9: #{net_forward.1} parent=1 // pred_fallthru
      _
    // Predicated region
    $region10: #{net_forward.1} parent=1 // pred_check
      _
    $region11: #{net_forward.1} parent=1 // pred_check_branch
      %23 = sbr.rel (0) target = $region13
    $region12: #{net_forward.1} parent=1 // pred_region
      _
    $region13: #{net_forward.1} parent=1 // pred_fallthru
      _
    // Predicated region
    $region14: #{net_forward.1} parent=1 // pred_check
      _
    $region15: #{net_forward.1} parent=1 // pred_check_branch
      %25 = sbr.rel (0) target = $region17
    $region16: #{net_forward.1} parent=1 // pred_region
      _
    $region17: #{net_forward.1} parent=1 // pred_fallthru
      _
    // Predicated region
    $region18: #{net_forward.1} parent=1 // pred_check
      _
    $region19: #{net_forward.1} parent=1 // pred_check_branch
      %27 = sbr.rel (0) target = $region21
    $region20: #{net_forward.1} parent=1 // pred_region
      _
    $region21: #{net_forward.1} parent=1 // pred_fallthru
      _
    // Predicated region
    $region22: #{net_forward.1} parent=1 // pred_check
      _
    $region23: #{net_forward.1} parent=1 // pred_check_branch
      %29 = sbr.rel (0) target = $region25
    $region24: #{net_forward.1} parent=1 // pred_region
      _
    $region25: #{net_forward.1} parent=1 // pred_fallthru
      _
    // Predicated region
    $region26: #{net_forward.1} parent=1 // pred_check
      _
    $region27: #{net_forward.1} parent=1 // pred_check_branch
      %31 = sbr.rel (0) target = $region29
    $region28: #{net_forward.1} parent=1 // pred_region
      _
    $region29: #{net_forward.1} parent=1 // pred_fallthru
      _
    // Predicated region
    $region30: #{net_forward.1} parent=1 // pred_check
      _
    $region31: #{net_forward.1} parent=1 // pred_check_branch
      %33 = sbr.rel (0) target = $region33
    $region32: #{net_forward.1} parent=1 // pred_region
      _
    $region33: #{net_forward.1} parent=1 // pred_fallthru
      _
    // Predicated region
    $region34: #{net_forward.1} parent=1 // pred_check
      _
    $region35: #{net_forward.1} parent=1 // pred_check_branch
      %35 = sbr.rel (0) target = $region37
    $region36: #{net_forward.1} parent=1 // pred_region
      _
    $region37: #{net_forward.1} parent=1 // pred_fallthru
      _
    // Predicated region
    $region38: #{net_forward.1} parent=1 // pred_check
      _
    $region39: #{net_forward.1} parent=1 // pred_check_branch
      %37 = sbr.rel (0) target = $region41
    $region40: #{net_forward.1} parent=1 // pred_region
      _
    $region41: #{net_forward.1} parent=1 // pred_fallthru
      _
    // Predicated region
    $region42: #{net_forward.1} parent=1 // pred_check
      _
    $region43: #{net_forward.1} parent=1 // pred_check_branch
      %39 = sbr.rel (0) target = $region45
    $region44: #{net_forward.1} parent=1 // pred_region
      _
    $region45: #{net_forward.1} parent=1 // pred_fallthru
      _
    // Predicated region
    $region46: #{net_forward.1} parent=1 // pred_check
      _
    $region47: #{net_forward.1} parent=1 // pred_check_branch
      %41 = sbr.rel (0) target = $region49
    $region48: #{net_forward.1} parent=1 // pred_region
      _
    $region49: #{net_forward.1} parent=1 // pred_fallthru
      _
    %v43 = vld [vmem:[%s0] sm:$0xff]
    %v44 = vld [vmem:[%s0 + $0x8] sm:$0xff]
    %v45 = vld [vmem:[%s0 + $0x10] sm:$0xff]
    %v46 = vld [vmem:[%s0 + $0x18] sm:$0xf]
    %v47 = vld [vmem:[%s1] sm:$0xff]
    %v48 = vld [vmem:[%s1 + $0x8] sm:$0xff]
    %v49 = vld [vmem:[%s1 + $0x10] sm:$0xff]
    %v50 = vld [vmem:[%s1 + $0x18] sm:$0xff]
    %v51 = vld [vmem:[%s1 + $0x20] sm:$0xff]
    %v52 = vld [vmem:[%s1 + $0x28] sm:$0xff]
    %v53 = vld [vmem:[%s1 + $0x30] sm:$0xff]
    %v54 = vld [vmem:[%s1 + $0x38] sm:$0xff]
    %v55 = vld [vmem:[%s1 + $0x40] sm:$0xff]
    %v56 = vld [vmem:[%s1 + $0x48] sm:$0xff]
    %v57 = vld [vmem:[%s1 + $0x50] sm:$0xff]
    %v58 = vld [vmem:[%s1 + $0x58] sm:$0xff]
    %v59 = vld [vmem:[%s1 + $0x60] sm:$0xff]
    %v60 = vld [vmem:[%s1 + $0x68] sm:$0xff]
    %v61 = vld [vmem:[%s1 + $0x70] sm:$0xff]
    %v62 = vld [vmem:[%s1 + $0x78] sm:$0xff]
    %v63 = vld [vmem:[%s1 + $0x80] sm:$0xff]
    %v64 = vld [vmem:[%s1 + $0x88] sm:$0xff]
    %v65 = vld [vmem:[%s1 + $0x90] sm:$0xff]
    %v66 = vld [vmem:[%s1 + $0x98] sm:$0xff]
    %v67 = vld [vmem:[%s1 + $0xa0] sm:$0xff]
    %v68 = vld [vmem:[%s1 + $0xa8] sm:$0xff]
    %v69 = vld [vmem:[%s1 + $0xb0] sm:$0xff]
    %v70 = vld [vmem:[%s1 + $0xb8] sm:$0xff]
    %v71 = vld [vmem:[%s1 + $0xc0] sm:$0xff]
    %v72 = vld [vmem:[%s1 + $0xc8] sm:$0xff]
    %v73 = vld [vmem:[%s1 + $0xd0] sm:$0xff]
    %v74 = vld [vmem:[%s1 + $0xd8] sm:$0xff]
    %v75 = vld [vmem:[%s1 + $0xe0] sm:$0xff]
    %v76 = vld [vmem:[%s1 + $0xe8] sm:$0xff]
    %v77 = vld [vmem:[%s1 + $0xf0] sm:$0xff]
    %v78 = vld [vmem:[%s1 + $0xf8] sm:$0xff]
    %v79 = vld [vmem:[%s1 + $0x100] sm:$0xff]
    %v80 = vld [vmem:[%s1 + $0x108] sm:$0xff]
    %v81 = vld [vmem:[%s1 + $0x110] sm:$0xff]
    %v82 = vld [vmem:[%s1 + $0x118] sm:$0xff]
    %v83 = vld [vmem:[%s1 + $0x120] sm:$0xff]
    %v84 = vld [vmem:[%s1 + $0x128] sm:$0xff]
    %v85 = vld [vmem:[%s1 + $0x130] sm:$0xff]
    %v86 = vld [vmem:[%s1 + $0x138] sm:$0xff]
    %v87 = vld [vmem:[%s1 + $0x140] sm:$0xff]
    %v88 = vld [vmem:[%s1 + $0x148] sm:$0xff]
    %v89 = vld [vmem:[%s1 + $0x150] sm:$0xff]
    %v90 = vld [vmem:[%s1 + $0x158] sm:$0xff]
    %v91 = vld [vmem:[%s1 + $0x160] sm:$0xff]
    %v92 = vld [vmem:[%s1 + $0x168] sm:$0xff]
    %v93 = vld [vmem:[%s1 + $0x170] sm:$0xff]
    %v94 = vld [vmem:[%s1 + $0x178] sm:$0xff]
    %v95 = vld [vmem:[%s1 + $0x180] sm:$0xff]
    %v96 = vld [vmem:[%s1 + $0x188] sm:$0xff]
    %v97 = vld [vmem:[%s1 + $0x190] sm:$0xff]
    %v98 = vld [vmem:[%s1 + $0x198] sm:$0xff]
    %v99 = vld [vmem:[%s1 + $0x1a0] sm:$0xff]
    %v100 = vld [vmem:[%s1 + $0x1a8] sm:$0xff]
    %v101 = vld [vmem:[%s1 + $0x1b0] sm:$0xff]
    %v102 = vld [vmem:[%s1 + $0x1b8] sm:$0xff]
    %v103 = vld [vmem:[%s1 + $0x1c0] sm:$0xff]
    %v104 = vld [vmem:[%s1 + $0x1c8] sm:$0xff]
    %v105 = vld [vmem:[%s1 + $0x1d0] sm:$0xff]
    %v106 = vld [vmem:[%s1 + $0x1d8] sm:$0xff]
    %v107 = vld [vmem:[%s1 + $0x1e0] sm:$0xff]
    %v108 = vld [vmem:[%s1 + $0x1e8] sm:$0xff]
    %v109 = vld [vmem:[%s1 + $0x1f0] sm:$0xff]
    %v110 = vld [vmem:[%s1 + $0x1f8] sm:$0xff]
    %v111 = vld [vmem:[%s1 + $0x200] sm:$0xff]
    %v112 = vld [vmem:[%s1 + $0x208] sm:$0xff]
    %v113 = vld [vmem:[%s1 + $0x210] sm:$0xff]
    %v114 = vld [vmem:[%s1 + $0x218] sm:$0xff]
    %v115 = vld [vmem:[%s1 + $0x220] sm:$0xff]
    %v116 = vld [vmem:[%s1 + $0x228] sm:$0xff]
    %v117 = vld [vmem:[%s1 + $0x230] sm:$0xff]
    %v118 = vld [vmem:[%s1 + $0x238] sm:$0xff]
    %v119 = vld [vmem:[%s1 + $0x240] sm:$0xff]
    %v120 = vld [vmem:[%s1 + $0x248] sm:$0xff]
    %v121 = vld [vmem:[%s1 + $0x250] sm:$0xff]
    %v122 = vld [vmem:[%s1 + $0x258] sm:$0xff]
    %v123 = vld [vmem:[%s1 + $0x260] sm:$0xff]
    %v124 = vld [vmem:[%s1 + $0x268] sm:$0xff]
    %v125 = vld [vmem:[%s1 + $0x270] sm:$0xff]
    %v126 = vld [vmem:[%s1 + $0x278] sm:$0xff]
    %v127 = vld [vmem:[%s1 + $0x280] sm:$0xff]
    %v128 = vld [vmem:[%s1 + $0x288] sm:$0xff]
    %v129 = vld [vmem:[%s1 + $0x290] sm:$0xff]
    %v130 = vld [vmem:[%s1 + $0x298] sm:$0xff]
    %v131 = vld [vmem:[%s1 + $0x2a0] sm:$0xff]
    %v132 = vld [vmem:[%s1 + $0x2a8] sm:$0xff]
    %v133 = vld [vmem:[%s1 + $0x2b0] sm:$0xff]
    %v134 = vld [vmem:[%s1 + $0x2b8] sm:$0xff]
    %v135 = vld [vmem:[%s1 + $0x2c0] sm:$0xff]
    %v136 = vld [vmem:[%s1 + $0x2c8] sm:$0xff]
    %v137 = vld [vmem:[%s1 + $0x2d0] sm:$0xff]
    %v138 = vld [vmem:[%s1 + $0x2d8] sm:$0xff]
    %v139 = vld [vmem:[%s1 + $0x2e0] sm:$0xff]
    %v140 = vld [vmem:[%s1 + $0x2e8] sm:$0xff]
    %v141 = vld [vmem:[%s1 + $0x2f0] sm:$0xff]
    %v142 = vld [vmem:[%s1 + $0x2f8] sm:$0xff]
    %v143 = vld [vmem:[%s1 + $0x300] sm:$0xff]
    %v144 = vld [vmem:[%s1 + $0x308] sm:$0xff]
    %v149 = vunpack.c.l.b16 %v43
    %v150 = vunpack.c.h.b16 %v43
    %v151 = vunpack.c.l.b16 %v44
    %v152 = vunpack.c.h.b16 %v44
    %v153 = vunpack.c.l.b16 %v45
    %v154 = vunpack.c.h.b16 %v45
    %v155 = vunpack.c.l.b16 %v46
    %v156 = vpack.c.b16 %v149, %v149
    %v157 = vpack.c.b16 %v150, %v150
    %v158 = vpack.c.b16 %v151, %v151
    %v159 = vpack.c.b16 %v152, %v152
    %v160 = vpack.c.b16 %v153, %v153
    %v161 = vpack.c.b16 %v154, %v154
    %v162 = vpack.c.b16 %v155, %v155
    %v267 = vunpack.c.l.b16 %v47
    %v268 = vunpack.c.h.b16 %v47
    %v269 = vunpack.c.l.b16 %v48
    %v270 = vunpack.c.h.b16 %v48
    %v271 = vunpack.c.l.b16 %v49
    %v272 = vunpack.c.h.b16 %v49
    %v273 = vunpack.c.l.b16 %v50
    %v274 = vunpack.c.h.b16 %v50
    %v275 = vunpack.c.l.b16 %v51
    %v276 = vunpack.c.h.b16 %v51
    %v277 = vunpack.c.l.b16 %v52
    %v278 = vunpack.c.h.b16 %v52
    %v279 = vunpack.c.l.b16 %v53
    %v280 = vunpack.c.h.b16 %v53
    %v281 = vunpack.c.l.b16 %v54
    %v282 = vunpack.c.h.b16 %v54
    %v283 = vunpack.c.l.b16 %v55
    %v284 = vunpack.c.h.b16 %v55
    %v285 = vunpack.c.l.b16 %v56
    %v286 = vunpack.c.h.b16 %v56
    %v287 = vunpack.c.l.b16 %v57
    %v288 = vunpack.c.h.b16 %v57
    %v289 = vunpack.c.l.b16 %v58
    %v290 = vunpack.c.h.b16 %v58
    %v291 = vunpack.c.l.b16 %v59
    %v292 = vunpack.c.h.b16 %v59
    %v293 = vunpack.c.l.b16 %v60
    %v294 = vunpack.c.h.b16 %v60
    %v295 = vunpack.c.l.b16 %v61
    %v296 = vunpack.c.h.b16 %v61
    %v297 = vunpack.c.l.b16 %v62
    %v298 = vunpack.c.h.b16 %v62
    %v299 = vunpack.c.l.b16 %v63
    %v300 = vunpack.c.h.b16 %v63
    %v301 = vunpack.c.l.b16 %v64
    %v302 = vunpack.c.h.b16 %v64
    %v303 = vunpack.c.l.b16 %v65
    %v304 = vunpack.c.h.b16 %v65
    %v305 = vunpack.c.l.b16 %v66
    %v306 = vunpack.c.h.b16 %v66
    %v307 = vunpack.c.l.b16 %v67
    %v308 = vunpack.c.h.b16 %v67
    %v309 = vunpack.c.l.b16 %v68
    %v310 = vunpack.c.h.b16 %v68
    %v311 = vunpack.c.l.b16 %v69
    %v312 = vunpack.c.h.b16 %v69
    %v313 = vunpack.c.l.b16 %v70
    %v314 = vunpack.c.h.b16 %v70
    %v315 = vunpack.c.l.b16 %v71
    %v316 = vunpack.c.h.b16 %v71
    %v317 = vunpack.c.l.b16 %v72
    %v318 = vunpack.c.h.b16 %v72
    %v319 = vunpack.c.l.b16 %v73
    %v320 = vunpack.c.h.b16 %v73
    %v321 = vunpack.c.l.b16 %v74
    %v322 = vunpack.c.h.b16 %v74
    %v323 = vunpack.c.l.b16 %v75
    %v324 = vunpack.c.h.b16 %v75
    %v325 = vunpack.c.l.b16 %v76
    %v326 = vunpack.c.h.b16 %v76
    %v327 = vunpack.c.l.b16 %v77
    %v328 = vunpack.c.h.b16 %v77
    %v329 = vunpack.c.l.b16 %v78
    %v330 = vunpack.c.h.b16 %v78
    %v331 = vunpack.c.l.b16 %v79
    %v332 = vunpack.c.h.b16 %v79
    %v333 = vunpack.c.l.b16 %v80
    %v334 = vunpack.c.h.b16 %v80
    %v335 = vunpack.c.l.b16 %v81
    %v336 = vunpack.c.h.b16 %v81
    %v337 = vunpack.c.l.b16 %v82
    %v338 = vunpack.c.h.b16 %v82
    %v339 = vunpack.c.l.b16 %v83
    %v340 = vunpack.c.h.b16 %v83
    %v341 = vunpack.c.l.b16 %v84
    %v342 = vunpack.c.h.b16 %v84
    %v343 = vunpack.c.l.b16 %v85
    %v344 = vunpack.c.h.b16 %v85
    %v345 = vunpack.c.l.b16 %v86
    %v346 = vunpack.c.h.b16 %v86
    %v347 = vunpack.c.l.b16 %v87
    %v348 = vunpack.c.h.b16 %v87
    %v349 = vunpack.c.l.b16 %v88
    %v350 = vunpack.c.h.b16 %v88
    %v351 = vunpack.c.l.b16 %v89
    %v352 = vunpack.c.h.b16 %v89
    %v353 = vunpack.c.l.b16 %v90
    %v354 = vunpack.c.h.b16 %v90
    %v355 = vunpack.c.l.b16 %v91
    %v356 = vunpack.c.h.b16 %v91
    %v357 = vunpack.c.l.b16 %v92
    %v358 = vunpack.c.h.b16 %v92
    %v359 = vunpack.c.l.b16 %v93
    %v360 = vunpack.c.h.b16 %v93
    %v361 = vunpack.c.l.b16 %v94
    %v362 = vunpack.c.h.b16 %v94
    %v363 = vunpack.c.l.b16 %v95
    %v364 = vunpack.c.h.b16 %v95
    %v365 = vunpack.c.l.b16 %v96
    %v366 = vunpack.c.h.b16 %v96
    %v367 = vunpack.c.l.b16 %v97
    %v368 = vunpack.c.h.b16 %v97
    %v369 = vunpack.c.l.b16 %v98
    %v370 = vunpack.c.h.b16 %v98
    %v371 = vunpack.c.l.b16 %v99
    %v372 = vunpack.c.h.b16 %v99
    %v373 = vunpack.c.l.b16 %v100
    %v374 = vunpack.c.h.b16 %v100
    %v375 = vunpack.c.l.b16 %v101
    %v376 = vunpack.c.h.b16 %v101
    %v377 = vunpack.c.l.b16 %v102
    %v378 = vunpack.c.h.b16 %v102
    %v379 = vunpack.c.l.b16 %v103
    %v380 = vunpack.c.h.b16 %v103
    %v381 = vunpack.c.l.b16 %v104
    %v382 = vunpack.c.h.b16 %v104
    %v383 = vunpack.c.l.b16 %v105
    %v384 = vunpack.c.h.b16 %v105
    %v385 = vunpack.c.l.b16 %v106
    %v386 = vunpack.c.h.b16 %v106
    %v387 = vunpack.c.l.b16 %v107
    %v388 = vunpack.c.h.b16 %v107
    %v389 = vunpack.c.l.b16 %v108
    %v390 = vunpack.c.h.b16 %v108
    %v391 = vunpack.c.l.b16 %v109
    %v392 = vunpack.c.h.b16 %v109
    %v393 = vunpack.c.l.b16 %v110
    %v394 = vunpack.c.h.b16 %v110
    %v395 = vunpack.c.l.b16 %v111
    %v396 = vunpack.c.h.b16 %v111
    %v397 = vunpack.c.l.b16 %v112
    %v398 = vunpack.c.h.b16 %v112
    %v399 = vunpack.c.l.b16 %v113
    %v400 = vunpack.c.h.b16 %v113
    %v401 = vunpack.c.l.b16 %v114
    %v402 = vunpack.c.h.b16 %v114
    %v403 = vunpack.c.l.b16 %v115
    %v404 = vunpack.c.h.b16 %v115
    %v405 = vunpack.c.l.b16 %v116
    %v406 = vunpack.c.h.b16 %v116
    %v407 = vunpack.c.l.b16 %v117
    %v408 = vunpack.c.h.b16 %v117
    %v409 = vunpack.c.l.b16 %v118
    %v410 = vunpack.c.h.b16 %v118
    %v411 = vunpack.c.l.b16 %v119
    %v412 = vunpack.c.h.b16 %v119
    %v413 = vunpack.c.l.b16 %v120
    %v414 = vunpack.c.h.b16 %v120
    %v415 = vunpack.c.l.b16 %v121
    %v416 = vunpack.c.h.b16 %v121
    %v417 = vunpack.c.l.b16 %v122
    %v418 = vunpack.c.h.b16 %v122
    %v419 = vunpack.c.l.b16 %v123
    %v420 = vunpack.c.h.b16 %v123
    %v421 = vunpack.c.l.b16 %v124
    %v422 = vunpack.c.h.b16 %v124
    %v423 = vunpack.c.l.b16 %v125
    %v424 = vunpack.c.h.b16 %v125
    %v425 = vunpack.c.l.b16 %v126
    %v426 = vunpack.c.h.b16 %v126
    %v427 = vunpack.c.l.b16 %v127
    %v428 = vunpack.c.h.b16 %v127
    %v429 = vunpack.c.l.b16 %v128
    %v430 = vunpack.c.h.b16 %v128
    %v431 = vunpack.c.l.b16 %v129
    %v432 = vunpack.c.h.b16 %v129
    %v433 = vunpack.c.l.b16 %v130
    %v434 = vunpack.c.h.b16 %v130
    %v435 = vunpack.c.l.b16 %v131
    %v436 = vunpack.c.h.b16 %v131
    %v437 = vunpack.c.l.b16 %v132
    %v438 = vunpack.c.h.b16 %v132
    %v439 = vunpack.c.l.b16 %v133
    %v440 = vunpack.c.h.b16 %v133
    %v441 = vunpack.c.l.b16 %v134
    %v442 = vunpack.c.h.b16 %v134
    %v443 = vunpack.c.l.b16 %v135
    %v444 = vunpack.c.h.b16 %v135
    %v445 = vunpack.c.l.b16 %v136
    %v446 = vunpack.c.h.b16 %v136
    %v447 = vunpack.c.l.b16 %v137
    %v448 = vunpack.c.h.b16 %v137
    %v449 = vunpack.c.l.b16 %v138
    %v450 = vunpack.c.h.b16 %v138
    %v451 = vunpack.c.l.b16 %v139
    %v452 = vunpack.c.h.b16 %v139
    %v453 = vunpack.c.l.b16 %v140
    %v454 = vunpack.c.h.b16 %v140
    %v455 = vunpack.c.l.b16 %v141
    %v456 = vunpack.c.h.b16 %v141
    %v457 = vunpack.c.l.b16 %v142
    %v458 = vunpack.c.h.b16 %v142
    %v459 = vunpack.c.l.b16 %v143
    %v460 = vunpack.c.h.b16 %v143
    %v461 = vunpack.c.l.b16 %v144
    %v462 = vunpack.c.h.b16 %v144
    %v463 = vpack.c.b16 %v269, %v267
    %v464 = vpack.c.b16 %v270, %v268
    %v465 = vpack.c.b16 %v273, %v271
    %v466 = vpack.c.b16 %v274, %v272
    %v467 = vpack.c.b16 %v277, %v275
    %v468 = vpack.c.b16 %v278, %v276
    %v469 = vpack.c.b16 %v281, %v279
    %v470 = vpack.c.b16 %v282, %v280
    %v471 = vpack.c.b16 %v285, %v283
    %v472 = vpack.c.b16 %v286, %v284
    %v473 = vpack.c.b16 %v289, %v287
    %v474 = vpack.c.b16 %v290, %v288
    %v475 = vpack.c.b16 %v293, %v291
    %v476 = vpack.c.b16 %v294, %v292
    %v477 = vpack.c.b16 %v297, %v295
    %v478 = vpack.c.b16 %v298, %v296
    %v479 = vpack.c.b16 %v301, %v299
    %v480 = vpack.c.b16 %v302, %v300
    %v481 = vpack.c.b16 %v305, %v303
    %v482 = vpack.c.b16 %v306, %v304
    %v483 = vpack.c.b16 %v309, %v307
    %v484 = vpack.c.b16 %v310, %v308
    %v485 = vpack.c.b16 %v313, %v311
    %v486 = vpack.c.b16 %v314, %v312
    %v487 = vpack.c.b16 %v317, %v315
    %v488 = vpack.c.b16 %v318, %v316
    %v489 = vpack.c.b16 %v321, %v319
    %v490 = vpack.c.b16 %v322, %v320
    %v491 = vpack.c.b16 %v325, %v323
    %v492 = vpack.c.b16 %v326, %v324
    %v493 = vpack.c.b16 %v329, %v327
    %v494 = vpack.c.b16 %v330, %v328
    %v495 = vpack.c.b16 %v333, %v331
    %v496 = vpack.c.b16 %v334, %v332
    %v497 = vpack.c.b16 %v337, %v335
    %v498 = vpack.c.b16 %v338, %v336
    %v499 = vpack.c.b16 %v341, %v339
    %v500 = vpack.c.b16 %v342, %v340
    %v501 = vpack.c.b16 %v345, %v343
    %v502 = vpack.c.b16 %v346, %v344
    %v503 = vpack.c.b16 %v349, %v347
    %v504 = vpack.c.b16 %v350, %v348
    %v505 = vpack.c.b16 %v353, %v351
    %v506 = vpack.c.b16 %v354, %v352
    %v507 = vpack.c.b16 %v357, %v355
    %v508 = vpack.c.b16 %v358, %v356
    %v509 = vpack.c.b16 %v361, %v359
    %v510 = vpack.c.b16 %v362, %v360
    %v511 = vpack.c.b16 %v365, %v363
    %v512 = vpack.c.b16 %v366, %v364
    %v513 = vpack.c.b16 %v369, %v367
    %v514 = vpack.c.b16 %v370, %v368
    %v515 = vpack.c.b16 %v373, %v371
    %v516 = vpack.c.b16 %v374, %v372
    %v517 = vpack.c.b16 %v377, %v375
    %v518 = vpack.c.b16 %v378, %v376
    %v519 = vpack.c.b16 %v381, %v379
    %v520 = vpack.c.b16 %v382, %v380
    %v521 = vpack.c.b16 %v385, %v383
    %v522 = vpack.c.b16 %v386, %v384
    %v523 = vpack.c.b16 %v389, %v387
    %v524 = vpack.c.b16 %v390, %v388
    %v525 = vpack.c.b16 %v393, %v391
    %v526 = vpack.c.b16 %v394, %v392
    %v527 = vpack.c.b16 %v397, %v395
    %v528 = vpack.c.b16 %v398, %v396
    %v529 = vpack.c.b16 %v401, %v399
    %v530 = vpack.c.b16 %v402, %v400
    %v531 = vpack.c.b16 %v405, %v403
    %v532 = vpack.c.b16 %v406, %v404
    %v533 = vpack.c.b16 %v409, %v407
    %v534 = vpack.c.b16 %v410, %v408
    %v535 = vpack.c.b16 %v413, %v411
    %v536 = vpack.c.b16 %v414, %v412
    %v537 = vpack.c.b16 %v417, %v415
    %v538 = vpack.c.b16 %v418, %v416
    %v539 = vpack.c.b16 %v421, %v419
    %v540 = vpack.c.b16 %v422, %v420
    %v541 = vpack.c.b16 %v425, %v423
    %v542 = vpack.c.b16 %v426, %v424
    %v543 = vpack.c.b16 %v429, %v427
    %v544 = vpack.c.b16 %v430, %v428
    %v545 = vpack.c.b16 %v433, %v431
    %v546 = vpack.c.b16 %v434, %v432
    %v547 = vpack.c.b16 %v437, %v435
    %v548 = vpack.c.b16 %v438, %v436
    %v549 = vpack.c.b16 %v441, %v439
    %v550 = vpack.c.b16 %v442, %v440
    %v551 = vpack.c.b16 %v445, %v443
    %v552 = vpack.c.b16 %v446, %v444
    %v553 = vpack.c.b16 %v449, %v447
    %v554 = vpack.c.b16 %v450, %v448
    %v555 = vpack.c.b16 %v453, %v451
    %v556 = vpack.c.b16 %v454, %v452
    %v557 = vpack.c.b16 %v457, %v455
    %v558 = vpack.c.b16 %v458, %v456
    %v559 = vpack.c.b16 %v461, %v459
    %v560 = vpack.c.b16 %v462, %v460
    %vm659 = vcmask 130048
    %v661 = vsel %vm659, %v162, 0
    %663 = vmatprep.subr.bf16.mxu0 %v464
    %664 = vmatpush1.bf16.msra.mxu0 %v463
    %665 = vmatprep.subr.bf16.mxu0 %v466
    %666 = vmatpush1.bf16.msra.mxu0 %v465
    %667 = vmatprep.subr.bf16.mxu0 %v468
    %668 = vmatpush1.bf16.msra.mxu0 %v467
    %669 = vmatprep.subr.bf16.mxu0 %v470
    %670 = vmatpush1.bf16.msra.mxu0 %v469
    %671 = vmatprep.subr.bf16.mxu0 %v472
    %672 = vmatpush1.bf16.msra.mxu0 %v471
    %673 = vmatprep.subr.bf16.mxu0 %v474
    %674 = vmatpush1.bf16.msra.mxu0 %v473
    %675 = vmatprep.subr.bf16.mxu0 %v476
    %676 = vmatpush1.bf16.msra.mxu0 %v475
    %677 = vmatprep.subr.bf16.mxu0 %v478
    %678 = vmatpush1.bf16.msra.mxu0 %v477
    %679 = vmatprep.subr.bf16.mxu0 %v480
    %680 = vmatpush1.bf16.msra.mxu0 %v479
    %681 = vmatprep.subr.bf16.mxu0 %v482
    %682 = vmatpush1.bf16.msra.mxu0 %v481
    %683 = vmatprep.subr.bf16.mxu0 %v484
    %684 = vmatpush1.bf16.msra.mxu0 %v483
    %685 = vmatprep.subr.bf16.mxu0 %v486
    %686 = vmatpush1.bf16.msra.mxu0 %v485
    %687 = vmatprep.subr.bf16.mxu0 %v488
    %688 = vmatpush1.bf16.msra.mxu0 %v487
    %689 = vmatprep.subr.bf16.mxu0 %v490
    %690 = vmatpush1.bf16.msra.mxu0 %v489
    %691 = vmatprep.subr.bf16.mxu0 %v492
    %692 = vmatpush1.bf16.msra.mxu0 %v491
    %693 = vmatprep.subr.bf16.mxu0 %v494
    %694 = vmatpush1.bf16.msra.mxu0 %v493
    %695 = vmatprep.mubr.bf16.mxu0 %v157
    %696 = vmatmul.mubr.bf16.gmra.mrb[0].mxu0 %v156
    %v697 = vpop.f32.mrb[0].mxu0
    %v698 = vadd.f32 0.0, %v697
    %v699 = vpop.f32.mrb[0].mxu0
    %v700 = vadd.f32 0.0, %v699
    %v701 = vpop.f32.mrb[0].mxu0
    %v702 = vpop.f32.mrb[0].mxu0
    %703 = vdwg.mxu0
    %704 = vmatprep.subr.bf16.mxu0 %v496
    %705 = vmatpush1.bf16.msra.mxu0 %v495
    %706 = vmatprep.subr.bf16.mxu0 %v498
    %707 = vmatpush1.bf16.msra.mxu0 %v497
    %708 = vmatprep.subr.bf16.mxu0 %v500
    %709 = vmatpush1.bf16.msra.mxu0 %v499
    %710 = vmatprep.subr.bf16.mxu0 %v502
    %711 = vmatpush1.bf16.msra.mxu0 %v501
    %712 = vmatprep.subr.bf16.mxu0 %v504
    %713 = vmatpush1.bf16.msra.mxu0 %v503
    %714 = vmatprep.subr.bf16.mxu0 %v506
    %715 = vmatpush1.bf16.msra.mxu0 %v505
    %716 = vmatprep.subr.bf16.mxu0 %v508
    %717 = vmatpush1.bf16.msra.mxu0 %v507
    %718 = vmatprep.subr.bf16.mxu0 %v510
    %719 = vmatpush1.bf16.msra.mxu0 %v509
    %720 = vmatprep.subr.bf16.mxu0 %v512
    %721 = vmatpush1.bf16.msra.mxu0 %v511
    %722 = vmatprep.subr.bf16.mxu0 %v514
    %723 = vmatpush1.bf16.msra.mxu0 %v513
    %724 = vmatprep.subr.bf16.mxu0 %v516
    %725 = vmatpush1.bf16.msra.mxu0 %v515
    %726 = vmatprep.subr.bf16.mxu0 %v518
    %727 = vmatpush1.bf16.msra.mxu0 %v517
    %728 = vmatprep.subr.bf16.mxu0 %v520
    %729 = vmatpush1.bf16.msra.mxu0 %v519
    %730 = vmatprep.subr.bf16.mxu0 %v522
    %731 = vmatpush1.bf16.msra.mxu0 %v521
    %732 = vmatprep.subr.bf16.mxu0 %v524
    %733 = vmatpush1.bf16.msra.mxu0 %v523
    %734 = vmatprep.subr.bf16.mxu0 %v526
    %735 = vmatpush1.bf16.msra.mxu0 %v525
    %736 = vmatprep.mubr.bf16.mxu0 %v159
    %737 = vmatmul.mubr.bf16.gmra.mrb[0].mxu0 %v158
    %v738 = vpop.f32.mrb[0].mxu0
    %v739 = vadd.f32 %v698, %v738
    %v740 = vpop.f32.mrb[0].mxu0
    %v741 = vadd.f32 %v700, %v740
    %v742 = vpop.f32.mrb[0].mxu0
    %v743 = vpop.f32.mrb[0].mxu0
    %744 = vdwg.mxu0
    %745 = vmatprep.subr.bf16.mxu0 %v528
    %746 = vmatpush1.bf16.msra.mxu0 %v527
    %747 = vmatprep.subr.bf16.mxu0 %v530
    %748 = vmatpush1.bf16.msra.mxu0 %v529
    %749 = vmatprep.subr.bf16.mxu0 %v532
    %750 = vmatpush1.bf16.msra.mxu0 %v531
    %751 = vmatprep.subr.bf16.mxu0 %v534
    %752 = vmatpush1.bf16.msra.mxu0 %v533
    %753 = vmatprep.subr.bf16.mxu0 %v536
    %754 = vmatpush1.bf16.msra.mxu0 %v535
    %755 = vmatprep.subr.bf16.mxu0 %v538
    %756 = vmatpush1.bf16.msra.mxu0 %v537
    %757 = vmatprep.subr.bf16.mxu0 %v540
    %758 = vmatpush1.bf16.msra.mxu0 %v539
    %759 = vmatprep.subr.bf16.mxu0 %v542
    %760 = vmatpush1.bf16.msra.mxu0 %v541
    %761 = vmatprep.subr.bf16.mxu0 %v544
    %762 = vmatpush1.bf16.msra.mxu0 %v543
    %763 = vmatprep.subr.bf16.mxu0 %v546
    %764 = vmatpush1.bf16.msra.mxu0 %v545
    %765 = vmatprep.subr.bf16.mxu0 %v548
    %766 = vmatpush1.bf16.msra.mxu0 %v547
    %767 = vmatprep.subr.bf16.mxu0 %v550
    %768 = vmatpush1.bf16.msra.mxu0 %v549
    %769 = vmatprep.subr.bf16.mxu0 %v552
    %770 = vmatpush1.bf16.msra.mxu0 %v551
    %771 = vmatprep.subr.bf16.mxu0 %v554
    %772 = vmatpush1.bf16.msra.mxu0 %v553
    %773 = vmatprep.subr.bf16.mxu0 %v556
    %774 = vmatpush1.bf16.msra.mxu0 %v555
    %775 = vmatprep.subr.bf16.mxu0 %v558
    %776 = vmatpush1.bf16.msra.mxu0 %v557
    %777 = vmatprep.mubr.bf16.mxu0 %v161
    %778 = vmatmul.mubr.bf16.gmra.mrb[0].mxu0 %v160
    %v779 = vpop.f32.mrb[0].mxu0
    %v780 = vadd.f32 %v739, %v779
    %v781 = vpop.f32.mrb[0].mxu0
    %v782 = vadd.f32 %v741, %v781
    %v783 = vpop.f32.mrb[0].mxu0
    %v784 = vpop.f32.mrb[0].mxu0
    %785 = vdwg.mxu0
    %786 = vmatprep.subr.bf16.mxu0 %v560
    %787 = vmatpush1.bf16.msra.mxu0 %v559
    %788 = vmatprep.subr.bf16.mxu0 0
    %789 = vmatpush1.bf16.msra.mxu0 0
    %790 = vmatprep.subr.bf16.mxu0 0
    %791 = vmatpush1.bf16.msra.mxu0 0
    %792 = vmatprep.subr.bf16.mxu0 0
    %793 = vmatpush1.bf16.msra.mxu0 0
    %794 = vmatprep.subr.bf16.mxu0 0
    %795 = vmatpush1.bf16.msra.mxu0 0
    %796 = vmatprep.subr.bf16.mxu0 0
    %797 = vmatpush1.bf16.msra.mxu0 0
    %798 = vmatprep.subr.bf16.mxu0 0
    %799 = vmatpush1.bf16.msra.mxu0 0
    %800 = vmatprep.subr.bf16.mxu0 0
    %801 = vmatpush1.bf16.msra.mxu0 0
    %802 = vmatprep.subr.bf16.mxu0 0
    %803 = vmatpush1.bf16.msra.mxu0 0
    %804 = vmatprep.subr.bf16.mxu0 0
    %805 = vmatpush1.bf16.msra.mxu0 0
    %806 = vmatprep.subr.bf16.mxu0 0
    %807 = vmatpush1.bf16.msra.mxu0 0
    %808 = vmatprep.subr.bf16.mxu0 0
    %809 = vmatpush1.bf16.msra.mxu0 0
    %810 = vmatprep.subr.bf16.mxu0 0
    %811 = vmatpush1.bf16.msra.mxu0 0
    %812 = vmatprep.subr.bf16.mxu0 0
    %813 = vmatpush1.bf16.msra.mxu0 0
    %814 = vmatprep.subr.bf16.mxu0 0
    %815 = vmatpush1.bf16.msra.mxu0 0
    %816 = vmatprep.subr.bf16.mxu0 0
    %817 = vmatpush1.bf16.msra.mxu0 0
    %818 = vmatprep.mubr.bf16.mxu0 0
    %819 = vmatmul.mubr.bf16.gmra.mrb[0].mxu0 %v661
    %v820 = vpop.f32.mrb[0].mxu0
    %v821 = vadd.f32 %v780, %v820
    %v822 = vpop.f32.mrb[0].mxu0
    %v823 = vadd.f32 %v782, %v822
    %v824 = vpop.f32.mrb[0].mxu0
    %v825 = vpop.f32.mrb[0].mxu0
    %826 = vdwg.mxu0
    %v827 = vld [vmem:[%s2] sm:$0x3]
    %v829 = vlaneseq
    %v830 = vshrl.u32 %v829, 7
    %v831 = vsub.s32 0, %v830
    %v832 = vrot.slane %v827, %v831
    %v833 = vlaneseq
    %v834 = vshrl.u32 %v833, 7
    %v835 = vsub.s32 1, %v834
    %v836 = vrot.slane %v827, %v835
    %v839 = vmul.f32 %v821, %v832
    %v840 = vmul.f32 %v823, %v836
    %v841 = vld [vmem:[%s3] sm:$0x3]
    %v843 = vlaneseq
    %v844 = vshrl.u32 %v843, 7
    %v845 = vsub.s32 0, %v844
    %v846 = vrot.slane %v841, %v845
    %v847 = vlaneseq
    %v848 = vshrl.u32 %v847, 7
    %v849 = vsub.s32 1, %v848
    %v850 = vrot.slane %v841, %v849
    %v853 = vadd.f32 %v839, %v846
    %v854 = vadd.f32 %v840, %v850
    %vm855 = vcmp.ge.f32.partialorder %v853, 0.0
    %vm856 = vcmp.ge.f32.partialorder %v854, 0.0
    %v857 = vsel %vm855, 1.0, -1.0
    %v858 = vsel %vm856, 1.0, -1.0
    %v859 = vpack.c.bf16 %v857, %v857
    %v860 = vpack.c.bf16 %v858, %v858
    %v861 = vld [vmem:[%s4] sm:$0xf]
    %v862 = vld [vmem:[%s4 + $0x4] sm:$0xf]
    %v863 = vld [vmem:[%s4 + $0x8] sm:$0xf]
    %v864 = vld [vmem:[%s4 + $0xc] sm:$0xf]
    %v865 = vld [vmem:[%s4 + $0x10] sm:$0xf]
    %v866 = vld [vmem:[%s4 + $0x14] sm:$0xf]
    %v867 = vld [vmem:[%s4 + $0x18] sm:$0xf]
    %v868 = vld [vmem:[%s4 + $0x1c] sm:$0xf]
    %v869 = vld [vmem:[%s4 + $0x20] sm:$0xf]
    %v870 = vld [vmem:[%s4 + $0x24] sm:$0xf]
    %v871 = vld [vmem:[%s4 + $0x28] sm:$0xf]
    %v872 = vld [vmem:[%s4 + $0x2c] sm:$0xf]
    %v873 = vld [vmem:[%s4 + $0x30] sm:$0xf]
    %v874 = vld [vmem:[%s4 + $0x34] sm:$0xf]
    %v875 = vld [vmem:[%s4 + $0x38] sm:$0xf]
    %v876 = vld [vmem:[%s4 + $0x3c] sm:$0xf]
    %v877 = vld [vmem:[%s4 + $0x40] sm:$0xf]
    %v878 = vld [vmem:[%s4 + $0x44] sm:$0xf]
    %v879 = vld [vmem:[%s4 + $0x48] sm:$0xf]
    %v880 = vld [vmem:[%s4 + $0x4c] sm:$0xf]
    %v881 = vld [vmem:[%s4 + $0x50] sm:$0xf]
    %v882 = vld [vmem:[%s4 + $0x54] sm:$0xf]
    %v883 = vld [vmem:[%s4 + $0x58] sm:$0xf]
    %v884 = vld [vmem:[%s4 + $0x5c] sm:$0xf]
    %v885 = vld [vmem:[%s4 + $0x60] sm:$0xf]
    %v886 = vld [vmem:[%s4 + $0x64] sm:$0xf]
    %v887 = vld [vmem:[%s4 + $0x68] sm:$0xf]
    %v888 = vld [vmem:[%s4 + $0x6c] sm:$0xf]
    %v889 = vld [vmem:[%s4 + $0x70] sm:$0xf]
    %v890 = vld [vmem:[%s4 + $0x74] sm:$0xf]
    %v891 = vld [vmem:[%s4 + $0x78] sm:$0xf]
    %v892 = vld [vmem:[%s4 + $0x7c] sm:$0xf]
    %v925 = vunpack.c.l.b16 %v861
    %v926 = vunpack.c.l.b16 %v862
    %v927 = vunpack.c.l.b16 %v863
    %v928 = vunpack.c.l.b16 %v864
    %v929 = vunpack.c.l.b16 %v865
    %v930 = vunpack.c.l.b16 %v866
    %v931 = vunpack.c.l.b16 %v867
    %v932 = vunpack.c.l.b16 %v868
    %v933 = vunpack.c.l.b16 %v869
    %v934 = vunpack.c.l.b16 %v870
    %v935 = vunpack.c.l.b16 %v871
    %v936 = vunpack.c.l.b16 %v872
    %v937 = vunpack.c.l.b16 %v873
    %v938 = vunpack.c.l.b16 %v874
    %v939 = vunpack.c.l.b16 %v875
    %v940 = vunpack.c.l.b16 %v876
    %v941 = vunpack.c.l.b16 %v877
    %v942 = vunpack.c.l.b16 %v878
    %v943 = vunpack.c.l.b16 %v879
    %v944 = vunpack.c.l.b16 %v880
    %v945 = vunpack.c.l.b16 %v881
    %v946 = vunpack.c.l.b16 %v882
    %v947 = vunpack.c.l.b16 %v883
    %v948 = vunpack.c.l.b16 %v884
    %v949 = vunpack.c.l.b16 %v885
    %v950 = vunpack.c.l.b16 %v886
    %v951 = vunpack.c.l.b16 %v887
    %v952 = vunpack.c.l.b16 %v888
    %v953 = vunpack.c.l.b16 %v889
    %v954 = vunpack.c.l.b16 %v890
    %v955 = vunpack.c.l.b16 %v891
    %v956 = vunpack.c.l.b16 %v892
    %v957 = vpack.c.b16 %v926, %v925
    %v958 = vpack.c.b16 %v928, %v927
    %v959 = vpack.c.b16 %v930, %v929
    %v960 = vpack.c.b16 %v932, %v931
    %v961 = vpack.c.b16 %v934, %v933
    %v962 = vpack.c.b16 %v936, %v935
    %v963 = vpack.c.b16 %v938, %v937
    %v964 = vpack.c.b16 %v940, %v939
    %v965 = vpack.c.b16 %v942, %v941
    %v966 = vpack.c.b16 %v944, %v943
    %v967 = vpack.c.b16 %v946, %v945
    %v968 = vpack.c.b16 %v948, %v947
    %v969 = vpack.c.b16 %v950, %v949
    %v970 = vpack.c.b16 %v952, %v951
    %v971 = vpack.c.b16 %v954, %v953
    %v972 = vpack.c.b16 %v956, %v955
    %989 = vmatprep.subr.bf16.mxu0 0
    %990 = vmatpush1.bf16.msra.mxu0 %v957
    %991 = vmatprep.subr.bf16.mxu0 0
    %992 = vmatpush1.bf16.msra.mxu0 %v958
    %993 = vmatprep.subr.bf16.mxu0 0
    %994 = vmatpush1.bf16.msra.mxu0 %v959
    %995 = vmatprep.subr.bf16.mxu0 0
    %996 = vmatpush1.bf16.msra.mxu0 %v960
    %997 = vmatprep.subr.bf16.mxu0 0
    %998 = vmatpush1.bf16.msra.mxu0 %v961
    %999 = vmatprep.subr.bf16.mxu0 0
    %1000 = vmatpush1.bf16.msra.mxu0 %v962
    %1001 = vmatprep.subr.bf16.mxu0 0
    %1002 = vmatpush1.bf16.msra.mxu0 %v963
    %1003 = vmatprep.subr.bf16.mxu0 0
    %1004 = vmatpush1.bf16.msra.mxu0 %v964
    %1005 = vmatprep.subr.bf16.mxu0 0
    %1006 = vmatpush1.bf16.msra.mxu0 %v965
    %1007 = vmatprep.subr.bf16.mxu0 0
    %1008 = vmatpush1.bf16.msra.mxu0 %v966
    %1009 = vmatprep.subr.bf16.mxu0 0
    %1010 = vmatpush1.bf16.msra.mxu0 %v967
    %1011 = vmatprep.subr.bf16.mxu0 0
    %1012 = vmatpush1.bf16.msra.mxu0 %v968
    %1013 = vmatprep.subr.bf16.mxu0 0
    %1014 = vmatpush1.bf16.msra.mxu0 %v969
    %1015 = vmatprep.subr.bf16.mxu0 0
    %1016 = vmatpush1.bf16.msra.mxu0 %v970
    %1017 = vmatprep.subr.bf16.mxu0 0
    %1018 = vmatpush1.bf16.msra.mxu0 %v971
    %1019 = vmatprep.subr.bf16.mxu0 0
    %1020 = vmatpush1.bf16.msra.mxu0 %v972
    %1021 = vmatprep.mubr.bf16.mxu0 %v860
    %1022 = vmatmul.mubr.bf16.gmra.mrb[0].mxu0 %v859
    %v1023 = vpop.f32.mrb[0].mxu0
    %v1024 = vadd.f32 0.0, %v1023
    %v1025 = vpop.f32.mrb[0].mxu0
    %v1026 = vpop.f32.mrb[0].mxu0
    %v1027 = vpop.f32.mrb[0].mxu0
    %1028 = vdwg.mxu0
    %v1029 = vld [vmem:[%s5] sm:$0x1]
    %v1031 = vlaneseq
    %v1032 = vshrl.u32 %v1031, 7
    %v1033 = vsub.s32 0, %v1032
    %v1034 = vrot.slane %v1029, %v1033
    %v1036 = vmul.f32 %v1024, %v1034
    %v1037 = vld [vmem:[%s6] sm:$0x1]
    %v1039 = vlaneseq
    %v1040 = vshrl.u32 %v1039, 7
    %v1041 = vsub.s32 0, %v1040
    %v1042 = vrot.slane %v1037, %v1041
    %v1044 = vadd.f32 %v1036, %v1042
    %vm1045 = vcmp.ge.f32.partialorder %v1044, 0.0
    %v1046 = vsel %vm1045, 1.0, -1.0
    %v1047 = vpack.c.bf16 %v1046, %v1046
    %v1048 = vld [vmem:[%s7] sm:$0xf]
    %v1049 = vld [vmem:[%s7 + $0x4] sm:$0xf]
    %v1050 = vld [vmem:[%s7 + $0x8] sm:$0xf]
    %v1051 = vld [vmem:[%s7 + $0xc] sm:$0xf]
    %v1052 = vld [vmem:[%s7 + $0x10] sm:$0xf]
    %v1053 = vld [vmem:[%s7 + $0x14] sm:$0xf]
    %v1054 = vld [vmem:[%s7 + $0x18] sm:$0xf]
    %v1055 = vld [vmem:[%s7 + $0x1c] sm:$0xf]
    %v1056 = vld [vmem:[%s7 + $0x20] sm:$0xf]
    %v1057 = vld [vmem:[%s7 + $0x24] sm:$0xf]
    %v1058 = vld [vmem:[%s7 + $0x28] sm:$0xf]
    %v1059 = vld [vmem:[%s7 + $0x2c] sm:$0xf]
    %v1060 = vld [vmem:[%s7 + $0x30] sm:$0xf]
    %v1061 = vld [vmem:[%s7 + $0x34] sm:$0xf]
    %v1062 = vld [vmem:[%s7 + $0x38] sm:$0xf]
    %v1063 = vld [vmem:[%s7 + $0x3c] sm:$0xf]
    %v1080 = vunpack.c.l.b16 %v1048
    %v1081 = vunpack.c.l.b16 %v1049
    %v1082 = vunpack.c.l.b16 %v1050
    %v1083 = vunpack.c.l.b16 %v1051
    %v1084 = vunpack.c.l.b16 %v1052
    %v1085 = vunpack.c.l.b16 %v1053
    %v1086 = vunpack.c.l.b16 %v1054
    %v1087 = vunpack.c.l.b16 %v1055
    %v1088 = vunpack.c.l.b16 %v1056
    %v1089 = vunpack.c.l.b16 %v1057
    %v1090 = vunpack.c.l.b16 %v1058
    %v1091 = vunpack.c.l.b16 %v1059
    %v1092 = vunpack.c.l.b16 %v1060
    %v1093 = vunpack.c.l.b16 %v1061
    %v1094 = vunpack.c.l.b16 %v1062
    %v1095 = vunpack.c.l.b16 %v1063
    %v1096 = vpack.c.b16 %v1081, %v1080
    %v1097 = vpack.c.b16 %v1083, %v1082
    %v1098 = vpack.c.b16 %v1085, %v1084
    %v1099 = vpack.c.b16 %v1087, %v1086
    %v1100 = vpack.c.b16 %v1089, %v1088
    %v1101 = vpack.c.b16 %v1091, %v1090
    %v1102 = vpack.c.b16 %v1093, %v1092
    %v1103 = vpack.c.b16 %v1095, %v1094
    %1112 = vmatprep.subr.bf16.mxu0 0
    %1113 = vmatpush1.bf16.msra.mxu0 %v1096
    %1114 = vmatprep.subr.bf16.mxu0 0
    %1115 = vmatpush1.bf16.msra.mxu0 %v1097
    %1116 = vmatprep.subr.bf16.mxu0 0
    %1117 = vmatpush1.bf16.msra.mxu0 %v1098
    %1118 = vmatprep.subr.bf16.mxu0 0
    %1119 = vmatpush1.bf16.msra.mxu0 %v1099
    %1120 = vmatprep.subr.bf16.mxu0 0
    %1121 = vmatpush1.bf16.msra.mxu0 %v1100
    %1122 = vmatprep.subr.bf16.mxu0 0
    %1123 = vmatpush1.bf16.msra.mxu0 %v1101
    %1124 = vmatprep.subr.bf16.mxu0 0
    %1125 = vmatpush1.bf16.msra.mxu0 %v1102
    %1126 = vmatprep.subr.bf16.mxu0 0
    %1127 = vmatpush1.bf16.msra.mxu0 %v1103
    %1128 = vmatprep.subr.bf16.mxu0 0
    %1129 = vmatpush1.bf16.msra.mxu0 0
    %1130 = vmatprep.subr.bf16.mxu0 0
    %1131 = vmatpush1.bf16.msra.mxu0 0
    %1132 = vmatprep.subr.bf16.mxu0 0
    %1133 = vmatpush1.bf16.msra.mxu0 0
    %1134 = vmatprep.subr.bf16.mxu0 0
    %1135 = vmatpush1.bf16.msra.mxu0 0
    %1136 = vmatprep.subr.bf16.mxu0 0
    %1137 = vmatpush1.bf16.msra.mxu0 0
    %1138 = vmatprep.subr.bf16.mxu0 0
    %1139 = vmatpush1.bf16.msra.mxu0 0
    %1140 = vmatprep.subr.bf16.mxu0 0
    %1141 = vmatpush1.bf16.msra.mxu0 0
    %1142 = vmatprep.subr.bf16.mxu0 0
    %1143 = vmatpush1.bf16.msra.mxu0 0
    %1144 = vmatprep.mubr.bf16.mxu0 0
    %1145 = vmatmul.mubr.bf16.gmra.mrb[0].mxu0 %v1047
    %v1146 = vpop.f32.mrb[0].mxu0
    %v1147 = vadd.f32 0.0, %v1146
    %v1148 = vpop.f32.mrb[0].mxu0
    %v1149 = vpop.f32.mrb[0].mxu0
    %v1150 = vpop.f32.mrb[0].mxu0
    %1151 = vdwg.mxu0
    %v1152 = vld [vmem:[%s8] sm:$0x1]
    %v1154 = vlaneseq
    %v1155 = vshrl.u32 %v1154, 7
    %v1156 = vsub.s32 0, %v1155
    %v1157 = vrot.slane %v1152, %v1156
    %v1159 = vmul.f32 %v1147, %v1157
    %v1160 = vld [vmem:[%s9] sm:$0x1]
    %v1162 = vlaneseq
    %v1163 = vshrl.u32 %v1162, 7
    %v1164 = vsub.s32 0, %v1163
    %v1165 = vrot.slane %v1160, %v1164
    %v1167 = vadd.f32 %v1159, %v1165
    %v1168 = vmax.f32 %v1167, -1.0
    %v1169 = vmin.f32 %v1168, 1.0
    %v1170 = vpack.c.bf16 %v1169, %v1169
    %v1171 = vld [vmem:[%s10] sm:$0xf]
    %v1172 = vld [vmem:[%s10 + $0x4] sm:$0xf]
    %v1173 = vld [vmem:[%s10 + $0x8] sm:$0xf]
    %v1174 = vld [vmem:[%s10 + $0xc] sm:$0xf]
    %v1175 = vld [vmem:[%s10 + $0x10] sm:$0xf]
    %v1176 = vld [vmem:[%s10 + $0x14] sm:$0xf]
    %v1177 = vld [vmem:[%s10 + $0x18] sm:$0xf]
    %v1178 = vld [vmem:[%s10 + $0x1c] sm:$0xf]
    %v1179 = vld [vmem:[%s10 + $0x20] sm:$0xf]
    %v1180 = vld [vmem:[%s10 + $0x24] sm:$0xf]
    %v1181 = vld [vmem:[%s10 + $0x28] sm:$0xf]
    %v1182 = vld [vmem:[%s10 + $0x2c] sm:$0xf]
    %v1183 = vld [vmem:[%s10 + $0x30] sm:$0xf]
    %v1184 = vld [vmem:[%s10 + $0x34] sm:$0xf]
    %v1185 = vld [vmem:[%s10 + $0x38] sm:$0xf]
    %v1186 = vld [vmem:[%s10 + $0x3c] sm:$0xf]
    %v1187 = vld [vmem:[%s11] sm:$0x1]
    %v1189 = vlaneseq
    %v1190 = vshrl.u32 %v1189, 7
    %v1191 = vsub.s32 0, %v1190
    %v1192 = vrot.slane %v1187, %v1191
    %v1210 = vunpack.c.l.b16 %v1171
    %v1211 = vunpack.c.l.b16 %v1172
    %v1212 = vunpack.c.l.b16 %v1173
    %v1213 = vunpack.c.l.b16 %v1174
    %v1214 = vunpack.c.l.b16 %v1175
    %v1215 = vunpack.c.l.b16 %v1176
    %v1216 = vunpack.c.l.b16 %v1177
    %v1217 = vunpack.c.l.b16 %v1178
    %v1218 = vunpack.c.l.b16 %v1179
    %v1219 = vunpack.c.l.b16 %v1180
    %v1220 = vunpack.c.l.b16 %v1181
    %v1221 = vunpack.c.l.b16 %v1182
    %v1222 = vunpack.c.l.b16 %v1183
    %v1223 = vunpack.c.l.b16 %v1184
    %v1224 = vunpack.c.l.b16 %v1185
    %v1225 = vunpack.c.l.b16 %v1186
    %v1226 = vpack.c.b16 %v1211, %v1210
    %v1227 = vpack.c.b16 %v1213, %v1212
    %v1228 = vpack.c.b16 %v1215, %v1214
    %v1229 = vpack.c.b16 %v1217, %v1216
    %v1230 = vpack.c.b16 %v1219, %v1218
    %v1231 = vpack.c.b16 %v1221, %v1220
    %v1232 = vpack.c.b16 %v1223, %v1222
    %v1233 = vpack.c.b16 %v1225, %v1224
    %1242 = vmatprep.subr.bf16.mxu0 0
    %1243 = vmatpush1.bf16.msra.mxu0 %v1226
    %1244 = vmatprep.subr.bf16.mxu0 0
    %1245 = vmatpush1.bf16.msra.mxu0 %v1227
    %1246 = vmatprep.subr.bf16.mxu0 0
    %1247 = vmatpush1.bf16.msra.mxu0 %v1228
    %1248 = vmatprep.subr.bf16.mxu0 0
    %1249 = vmatpush1.bf16.msra.mxu0 %v1229
    %1250 = vmatprep.subr.bf16.mxu0 0
    %1251 = vmatpush1.bf16.msra.mxu0 %v1230
    %1252 = vmatprep.subr.bf16.mxu0 0
    %1253 = vmatpush1.bf16.msra.mxu0 %v1231
    %1254 = vmatprep.subr.bf16.mxu0 0
    %1255 = vmatpush1.bf16.msra.mxu0 %v1232
    %1256 = vmatprep.subr.bf16.mxu0 0
    %1257 = vmatpush1.bf16.msra.mxu0 %v1233
    %1258 = vmatprep.subr.bf16.mxu0 0
    %1259 = vmatpush1.bf16.msra.mxu0 0
    %1260 = vmatprep.subr.bf16.mxu0 0
    %1261 = vmatpush1.bf16.msra.mxu0 0
    %1262 = vmatprep.subr.bf16.mxu0 0
    %1263 = vmatpush1.bf16.msra.mxu0 0
    %1264 = vmatprep.subr.bf16.mxu0 0
    %1265 = vmatpush1.bf16.msra.mxu0 0
    %1266 = vmatprep.subr.bf16.mxu0 0
    %1267 = vmatpush1.bf16.msra.mxu0 0
    %1268 = vmatprep.subr.bf16.mxu0 0
    %1269 = vmatpush1.bf16.msra.mxu0 0
    %1270 = vmatprep.subr.bf16.mxu0 0
    %1271 = vmatpush1.bf16.msra.mxu0 0
    %1272 = vmatprep.subr.bf16.mxu0 0
    %1273 = vmatpush1.bf16.msra.mxu0 0
    %1274 = vmatprep.mubr.bf16.mxu0 0
    %1275 = vmatmul.mubr.bf16.gmra.mrb[0].mxu0 %v1170
    %v1276 = vpop.f32.mrb[0].mxu0
    %v1277 = vadd.f32 %v1192, %v1276
    %v1278 = vpop.f32.mrb[0].mxu0
    %v1279 = vpop.f32.mrb[0].mxu0
    %v1280 = vpop.f32.mrb[0].mxu0
    %1281 = vdwg.mxu0
    %1282 = vmax.xlane.f32.xlu0 %v1277
    %v1283 = vpop.xlane.xlu0 %1282
    %v1284 = vsub.f32 %v1277, %v1283
    %v1285 = vmul.f32 %v1284, 1.442695
    %v1286 = vpow.pop %v1285
    %1287 = vadd.xlane.f32.xlu0 %v1286
    %v1288 = vpop.xlane.xlu0 %1287
    %v1289 = vlog2.pop %v1288
    %v1290 = vmul.f32 %v1289, 0.6931472
    %v1291 = vadd.f32 %v1290, %v1283
    %v1292 = vsub.f32 %v1277, %v1291
    %1293 = vst [vmem:[#allocation2] sm:$0xff] %v1292
    // Predicated region
    $region50: #{net_forward.1} parent=1 // pred_check
      _
    $region51: #{net_forward.1} parent=1 // pred_check_branch
      %1295 = sbr.rel (0) target = $region53
    $region52: #{net_forward.1} parent=1 // pred_region
      %s1297 = ssub.s32 128, 128
      %1298 = vsyncadd [#allocation3], %s1297
      %s1300 = sshll.u32 [#allocation2], 4
      %s1301 = int_to_ptr.vmem [resolvable:$true] %s1300
      %1303 = dma.vmem_to_hbm [thread:$0]  %s1301, 128, %s12, [#allocation3]
    $region53: #{net_forward.1} parent=1 // pred_fallthru
      _
    // Predicated region
    $region54: #{net_forward.1} parent=1 // pred_check
      _
    $region55: #{net_forward.1} parent=1 // pred_check_branch
      %1305 = sbr.rel (0) target = $region57
    $region56: #{net_forward.1} parent=1 // pred_region
      %1306 = dma.done [#allocation3], 128
    $region57: #{net_forward.1} parent=1 // pred_fallthru
      _
    %1307 = vsyncpa [#allocation3], 1

</llo_original>
